<compile_context>
chip_gen: v5e
topology: v5e:2x2
jax: 0.10.0
libtpu: 0.0.40
codegen_flags: <defaults>
</compile_context>

<pallas_src>
import math

import jax
import jax.numpy as jnp
from jax.experimental import pallas as pl
from jax.experimental.pallas import tpu as pltpu


def make_positional_encoding(d_model: int, max_len: int = 5000) -> jnp.ndarray:
    """Deterministic buffer identical to the PyTorch __init__ (no checkpoint)."""
    position = jnp.arange(0, max_len, dtype=jnp.float32)[:, None]            # (max_len, 1)
    div_term = jnp.exp(
        jnp.arange(0, d_model, 2, dtype=jnp.float32) * -(math.log(10000.0) / d_model)
    )                                                                         # (d_model//2,)
    angles = position * div_term                                              # (max_len, d_model//2)
    pe = jnp.zeros((max_len, d_model), dtype=jnp.float32)
    pe = pe.at[:, 0::2].set(jnp.sin(angles))
    pe = pe.at[:, 1::2].set(jnp.cos(angles))
    return pe                                                                 # (max_len, d_model)


def _add_pe_kernel(x_ref, pe_ref, o_ref):
    # Batch-folded path: x_ref (TB, R, C) + pe_ref (R, C)  -> broadcast over TB.
    # Row-tiled path   : x_ref (TR, C)    + pe_ref (TR, C).
    # jnp promotion handles mixed dtypes (e.g. bf16 x + f32 pe -> f32).
    o_ref[...] = (x_ref[...] + pe_ref[...]).astype(o_ref.dtype)


_DEFAULT_TILE_BYTES = 4 * 1024 * 1024   # ~4 MiB per buffer -> ~24 MiB live (f32, 2x buffered)
_VMEM_LIMIT_CAP = 48 * 1024 * 1024      # stay well under v7x's 64 MiB physical VMEM
_VMEM_LIMIT_FLOOR = 16 * 1024 * 1024


def _round_up(v: int, m: int) -> int:
    return ((v + m - 1) // m) * m


def positional_encoding_forward(
    x: jnp.ndarray,
    pe: jnp.ndarray,
    *,
    max_tile_bytes: int = _DEFAULT_TILE_BYTES,
    donate_x: bool = False,
) -> jnp.ndarray:
    """x: (B, S, D); pe: (max_len, D). Returns x + pe[None, :S, :] (PyTorch promotion)."""
    B, S, D = x.shape
    if S > pe.shape[0]:
        raise ValueError(f"seq_len={S} exceeds positional-encoding max_len={pe.shape[0]}")

    out_dtype = jnp.promote_types(x.dtype, pe.dtype)     # matches torch: bf16 x + f32 pe -> f32
    pe_slice = pe[:S, :].astype(out_dtype)               # static slice, plain-JAX glue

    x_item = jnp.dtype(x.dtype).itemsize
    out_item = jnp.dtype(out_dtype).itemsize
    pe_item = out_item
    max_item = max(x_item, out_item)
    min_item = min(x_item, out_item)
    sublane = max(8, 32 // min_item)                      # 8 f32 / 16 bf16 / 32 int8-fp8

    # ---- lane-dense 2-D layout for the (S, D) part ----
    if D % 128 == 0:
        R, C = S, D
        x3, pe2 = x, pe_slice
        reshaped = False
    elif (S * D) % 128 == 0:
        # e.g. D=32: flatten (S, D) -> (R, 128) so stores are full 128-lane vst.
        C = 128
        R = (S * D) // C
        x3 = x.reshape(B, R, C)
        pe2 = pe_slice.reshape(R, C)
        reshaped = True
    else:
        R, C = S, D
        x3, pe2 = x, pe_slice
        reshaped = False
        # TODO(synk): if this fallback occurs in production with small D, pad D to a
        # multiple of 128 at model-build time to keep full-lane stores (avoid vst.msk).

    c_pad = _round_up(C, 128)
    tile_elems = max(1, max_tile_bytes // max_item)

    if R * c_pad <= tile_elems:
        # ---------- batch-folded path (small S*D per batch element) ----------
        per_b_padded = _round_up(R, sublane) * c_pad      # padded VMEM footprint per batch elem
        TB = max(1, tile_elems // max(1, per_b_padded))
        TB = min(TB, B)
        n_bt = pl.cdiv(B, TB)
        if n_bt == 1 and B >= 2:
            TB = pl.cdiv(B, 2)                            # >=2 grid steps so both v7x TCs get work
            n_bt = pl.cdiv(B, TB)
        grid = (n_bt,)
        in_specs = [
            pl.BlockSpec((TB, R, C), lambda i: (i, 0, 0)),
            pl.BlockSpec((R, C), lambda i: (0, 0)),       # constant index -> resident, fetched once
        ]
        out_spec = pl.BlockSpec((TB, R, C), lambda i: (i, 0, 0))
        semantics = ("parallel",)
        x_tile_b = TB * _round_up(R, sublane) * c_pad * x_item
        o_tile_b = TB * _round_up(R, sublane) * c_pad * out_item
        pe_tile_b = _round_up(R, sublane) * c_pad * pe_item
    else:
        # ---------- row-tiled path (large S*D) ----------
        rows = max(sublane, (tile_elems // c_pad) // sublane * sublane)
        TR = min(rows, R)
        # R*c_pad > tile_elems here, so cdiv(R, TR) >= 2: leading parallel axis feeds both v7x TCs.
        grid = (pl.cdiv(R, TR), B)                        # row tiles outer, batch inner
        in_specs = [
            pl.BlockSpec((None, TR, C), lambda r, b: (b, r, 0)),   # batch dim squeezed
            pl.BlockSpec((TR, C), lambda r, b: (r, 0)),            # b-independent -> resident over b
        ]
        out_spec = pl.BlockSpec((None, TR, C), lambda r, b: (b, r, 0))
        semantics = ("parallel", "parallel")
        x_tile_b = TR * c_pad * x_item
        o_tile_b = TR * c_pad * out_item
        pe_tile_b = TR * c_pad * pe_item

    # Worst-case live set with default double-buffering everywhere, plus 50% headroom.
    live_bytes = 2 * (x_tile_b + o_tile_b + pe_tile_b)
    vmem_limit = int(min(_VMEM_LIMIT_CAP, max(_VMEM_LIMIT_FLOOR, live_bytes + live_bytes // 2)))

    cost = pl.CostEstimate(
        flops=B * S * D,
        transcendentals=0,
        bytes_accessed=B * S * D * (x_item + out_item) + S * D * pe_item,
    )

    aliases = {0: 0} if (donate_x and x3.dtype == out_dtype) else {}

    out = pl.pallas_call(
        _add_pe_kernel,
        out_shape=jax.ShapeDtypeStruct((B, R, C), out_dtype),
        grid_spec=pltpu.PrefetchScalarGridSpec(
            num_scalar_prefetch=0,
            grid=grid,
            in_specs=in_specs,
            out_specs=out_spec,
        ),
        compiler_params=pltpu.CompilerParams(
            dimension_semantics=semantics,
            vmem_limit_bytes=vmem_limit,
        ),
        cost_estimate=cost,
        input_output_aliases=aliases,
    )(x3, pe2)

    if reshaped:
        out = out.reshape(B, S, D)
    return out


if __name__ == "__main__":
    key = jax.random.PRNGKey(0)

    # Case 1: module-like small shapes, D=32 (<128) -> lane-dense reshape + batch-folded path.
    B, S, D = 2, 8, 32
    pe = make_positional_encoding(D, max_len=64)
    x = jax.random.normal(key, (B, S, D), dtype=jnp.float32)
    out = jax.block_until_ready(positional_encoding_forward(x, pe))
    ref = x + pe[None, :S, :]
    assert out.shape == (B, S, D) and out.dtype == jnp.float32
    assert jnp.allclose(out, ref, atol=1e-6), "mismatch vs reference (D=32 path)"

    # Case 2: D multiple of 128 -> direct layout, batch-folded path.
    B2, S2, D2 = 2, 16, 128
    pe_2 = make_positional_encoding(D2, max_len=64)
    x2 = jax.random.normal(jax.random.PRNGKey(1), (B2, S2, D2), dtype=jnp.float32)
    out2 = jax.block_until_ready(positional_encoding_forward(x2, pe_2))
    ref2 = x2 + pe_2[None, :S2, :]
    assert jnp.allclose(out2, ref2, atol=1e-6), "mismatch vs reference (D=128 path)"

    # Case 3: row-tiled path exercised at small shapes via a tiny tile budget.
    B3, S3, D3 = 4, 64, 128
    pe_3 = make_positional_encoding(D3, max_len=128)
    x3 = jax.random.normal(jax.random.PRNGKey(2), (B3, S3, D3), dtype=jnp.float32)
    out3 = jax.block_until_ready(
        positional_encoding_forward(x3, pe_3, max_tile_bytes=16 * 1024)
    )
    ref3 = x3 + pe_3[None, :S3, :]
    assert jnp.allclose(out3, ref3, atol=1e-6), "mismatch vs reference (row-tiled path)"

    # Case 4: bf16 input promotes to f32 output (matches PyTorch vs fp32 pe buffer).
    x4 = x.astype(jnp.bfloat16)
    out4 = jax.block_until_ready(positional_encoding_forward(x4, pe))
    ref4 = x4.astype(jnp.float32) + pe[None, :S, :]
    assert out4.dtype == jnp.float32
    assert jnp.allclose(out4, ref4, atol=1e-2), "mismatch vs reference (bf16 promotion path)"

    print("KERNEL_OK")
</pallas_src>

<mosaic_0001>
module attributes {stable_mosaic.version = 11 : i64} {
  func.func @_add_pe_kernel(%arg0: i32, %arg1: memref<1x2x128xf32, #tpu.memory_space<vmem>>, %arg2: memref<2x128xf32, #tpu.memory_space<vmem>>, %arg3: memref<1x2x128xf32, #tpu.memory_space<vmem>>) attributes {dimension_semantics = [#tpu.dimension_semantics<parallel>], iteration_bounds = array<i64: 2>, scalar_prefetch = 0 : i64, scratch_operands = 0 : i64, tpu.core_type = #tpu.core_type<tc>, window_params = [{transform_indices = @transform_0, window_bounds = array<i64: 1, 2, 128>}, {pipeline_mode = #tpu.pipeline_mode<synchronous>, transform_indices = @transform_1, window_bounds = array<i64: 2, 128>}, {transform_indices = @transform_2, window_bounds = array<i64: 1, 2, 128>}]} {
    %c0 = arith.constant 0 : index
    %c0_0 = arith.constant 0 : index
    %c0_1 = arith.constant 0 : index
    %0 = vector.load %arg1[%c0, %c0_0, %c0_1] : memref<1x2x128xf32, #tpu.memory_space<vmem>>, vector<1x2x128xf32>
    %c0_2 = arith.constant 0 : index
    %c0_3 = arith.constant 0 : index
    %1 = vector.load %arg2[%c0_2, %c0_3] : memref<2x128xf32, #tpu.memory_space<vmem>>, vector<2x128xf32>
    %2 = vector.shape_cast %1 : vector<2x128xf32> to vector<1x2x128xf32>
    %3 = arith.addf %0, %2 : vector<1x2x128xf32>
    %c0_4 = arith.constant 0 : index
    %c0_5 = arith.constant 0 : index
    %c0_6 = arith.constant 0 : index
    %4 = vector.load %arg3[%c0_4, %c0_5, %c0_6] : memref<1x2x128xf32, #tpu.memory_space<vmem>>, vector<1x2x128xf32>
    tpu.vector_store %arg3[%c0_4, %c0_5, %c0_6], %3 {strides = array<i32>} : memref<1x2x128xf32, #tpu.memory_space<vmem>>, vector<1x2x128xf32>,
    return
  }
  func.func @transform_0(%arg0: i32) -> (i32, i32, i32) {
    %c0_i32 = arith.constant 0 : i32
    %c0_i32_0 = arith.constant 0 : i32
    %c0_i32_1 = arith.constant 0 : i32
    return %arg0, %c0_i32, %c0_i32_0 : i32, i32, i32
  }
  func.func @transform_1(%arg0: i32) -> (i32, i32) {
    %c0_i32 = arith.constant 0 : i32
    %c0_i32_0 = arith.constant 0 : i32
    %c0_i32_1 = arith.constant 0 : i32
    return %c0_i32, %c0_i32_0 : i32, i32
  }
  func.func @transform_2(%arg0: i32) -> (i32, i32, i32) {
    %c0_i32 = arith.constant 0 : i32
    %c0_i32_0 = arith.constant 0 : i32
    %c0_i32_1 = arith.constant 0 : i32
    return %arg0, %c0_i32, %c0_i32_0 : i32, i32, i32
  }
}

</mosaic_0001>

<llo_original>
// kernel: tpu_custom_call.1
$region0: #{tpu_custom_call.1}
  #allocation0 [shape = 'u32[]', space=smem, size = 0x4, offset = 0x4, fixed_abs, tag = 'smem constant byte address 0x4 - core index']
  #allocation1 [shape = 'u32[72,128]{1,0:T(1,128)}', space=vmem, size = 0x9000, scoped, tag = 'internal scratch']
  %s0 = inlined_call_operand.hbm [shape: f32[2,2,128], index: 0, kind: input, shape index: {}]
  %s1 = inlined_call_operand.hbm [shape: f32[2,128], index: 1, kind: input, shape index: {}]
  %s2 = inlined_call_operand.hbm [shape: f32[2,2,128], index: 2, kind: output, shape index: {}]
  %s3 = sld [smem:[#allocation0]]
  $region49: #{tpu_custom_call.1} parent=0
    _
  %s5 = ssub.s32 1, %s3
  %s6 = scalar_select 0, %s5, %s3
  $region1: #{tpu_custom_call.1} parent=0
    #allocation2 [shape = 'u8[2048]{0}', space=vmem, size = 0x800, scoped, tag = 'input window, operand 0']
    #allocation3 [shape = 's32[2]{0}', space=sflag, size = 0x8, scoped, tag = 'scoped memory for tpu_custom_call.1']
    #allocation4 [shape = 's32[2]{0}', space=sflag, size = 0x8, scoped, tag = 'scoped memory for tpu_custom_call.1']
    #allocation5 [shape = 'u8[1024]{0}', space=vmem, size = 0x400, scoped, tag = 'input window, operand 1, single buffered']
    #allocation6 [shape = 's32[1]{0}', space=sflag, size = 0x4, scoped, tag = 'scoped memory for tpu_custom_call.1']
    #allocation7 [shape = 'u8[2048]{0}', space=vmem, size = 0x800, scoped, tag = 'output window, operand 0']
    %7 = vsyncpa [#allocation3], 0
    %s8 = scalar_lea.sflag [#allocation3], 1
    %9 = vsyncpa %s8, 0
    %10 = vsyncpa [#allocation6], 0
    %11 = vsyncpa [#allocation4], 0
    %s12 = scalar_lea.sflag [#allocation4], 1
    %13 = vsyncpa %s12, 0
    loop: start=0, step=1, limit=4
    $region2: #{tpu_custom_call.1} parent=1 // loop_pre_header
      _
    $region3: #{tpu_custom_call.1} parent=1 // loop_header
      %s15 = sphi 0, %s19
      %p16 = scmp.ge.s32.totalorder %s15, 4
      %s25 = sphi 0, %s27
      %s28 = sphi 0, %s25
      %s29 = sphi 0, %s28
      %s45 = sphi 0, %s29
      %s49 = sphi 0, %s49
      %s51 = sphi 0, %s49
      %s52 = sphi 0, %s51
      %s66 = sphi 0, %s52
      %s72 = sphi 0, %s74
      %s75 = sphi 0, %s72
      %s76 = sphi 0, %s75
      %s92 = sphi 0, %s76
    $region4: #{tpu_custom_call.1} parent=1 // loop_header_branch
      %18 = sbr.rel (%p16) target = $region8
    $region5: #{tpu_custom_call.1} parent=1 // loop_body
      %s20 = ssub.s32 %s15, 1
      %s21 = ssub.s32 %s15, 2
      %s22 = sadd.s32 %s15, 1
      %s23 = ssub.s32 %s15, %s22
      %p24 = scmp.eq.s32.totalorder %s23, 0
      %s26 = sadd.s32 %s25, 1
      %s27 = scalar_select %p24, %s25, %s26
      %p30 = pneg %p24
      %p31 = scmp.eq.s32.totalorder %s15, 1
      %p32 = por %p30, %p31
      %p33 = scmp.ne.s32.totalorder %s25, %s28
      %p34 = scmp.eq.s32.totalorder %s15, 0
      %p35 = por %p33, %p34
      %p36 = scmp.ne.s32.totalorder %s25, %s28
      %p37 = scmp.eq.s32.totalorder %s20, 1
      %p38 = por %p36, %p37
      %p39 = scmp.ne.s32.totalorder %s28, %s29
      %p40 = scmp.eq.s32.totalorder %s20, 0
      %p41 = por %p39, %p40
      %p42 = scmp.ne.s32.totalorder %s28, %s29
      %p43 = scmp.eq.s32.totalorder %s21, 1
      %p44 = por %p42, %p43
      %p46 = scmp.ne.s32.totalorder %s29, %s45
      %p47 = scmp.eq.s32.totalorder %s21, 0
      %p48 = por %p46, %p47
      %s50 = sadd.s32 %s49, 1
      %p53 = scmp.eq.s32.totalorder %s15, 1
      %p54 = scmp.ne.s32.totalorder %s49, %s51
      %p55 = scmp.eq.s32.totalorder %s15, 0
      %p56 = por %p54, %p55
      %p57 = scmp.ne.s32.totalorder %s49, %s51
      %p58 = scmp.eq.s32.totalorder %s20, 1
      %p59 = por %p57, %p58
      %p60 = scmp.ne.s32.totalorder %s51, %s52
      %p61 = scmp.eq.s32.totalorder %s20, 0
      %p62 = por %p60, %p61
      %p63 = scmp.ne.s32.totalorder %s51, %s52
      %p64 = scmp.eq.s32.totalorder %s21, 1
      %p65 = por %p63, %p64
      %p67 = scmp.ne.s32.totalorder %s52, %s66
      %p68 = scmp.eq.s32.totalorder %s21, 0
      %p69 = por %p67, %p68
      %s70 = ssub.s32 %s15, %s22
      %p71 = scmp.eq.s32.totalorder %s70, 0
      %s73 = sadd.s32 %s72, 1
      %s74 = scalar_select %p71, %s72, %s73
      %p77 = pneg %p71
      %p78 = scmp.eq.s32.totalorder %s15, 1
      %p79 = por %p77, %p78
      %p80 = scmp.ne.s32.totalorder %s72, %s75
      %p81 = scmp.eq.s32.totalorder %s15, 0
      %p82 = por %p80, %p81
      %p83 = scmp.ne.s32.totalorder %s72, %s75
      %p84 = scmp.eq.s32.totalorder %s20, 1
      %p85 = por %p83, %p84
      %p86 = scmp.ne.s32.totalorder %s75, %s76
      %p87 = scmp.eq.s32.totalorder %s20, 0
      %p88 = por %p86, %p87
      %p89 = scmp.ne.s32.totalorder %s75, %s76
      %p90 = scmp.eq.s32.totalorder %s21, 1
      %p91 = por %p89, %p90
      %p93 = scmp.ne.s32.totalorder %s76, %s92
      %p94 = scmp.eq.s32.totalorder %s21, 0
      %p95 = por %p93, %p94
      %p96 = scmp.le.s32.totalorder 1, %s15
      %p97 = scmp.lt.s32.totalorder %s15, 3
      %p98 = pnand %p96, %p97
      %p99 = pneg %p98
      // Predicated region
      $region9: #{tpu_custom_call.1} parent=5 // pred_check
        _
      $region10: #{tpu_custom_call.1} parent=5 // pred_check_branch
        %101 = sbr.rel (%p98) target = $region12
      $region11: #{tpu_custom_call.1} parent=5 // pred_region
        %s102 = ssub.s32 %s15, 1
        // Predicated region
        $region13: #{tpu_custom_call.1} parent=11 // pred_check
          %p103 = pneg %p62
        $region14: #{tpu_custom_call.1} parent=11 // pred_check_branch
          %105 = sbr.rel (%p103) target = $region16
        $region15: #{tpu_custom_call.1} parent=11 // pred_region
          %107 = vsyncadd [#allocation6], 0
          %s109 = sshll.u32 %s1, 4
          %s110 = int_to_ptr.hbm [resolvable:$true] %s109
          %s111 = sshll.u32 [#allocation5], 4
          %s112 = int_to_ptr.vmem [resolvable:$true] %s111
          %114 = dma.hbm_to_vmem [thread:$0]  %s110, 32, %s112, [#allocation6]
        $region16: #{tpu_custom_call.1} parent=11 // pred_fallthru
          _
      $region12: #{tpu_custom_call.1} parent=5 // pred_fallthru
        _
      %p115 = scmp.lt.s32.totalorder %s15, 2
      // Predicated region
      $region17: #{tpu_custom_call.1} parent=5 // pred_check
        %p116 = pneg %p115
      $region18: #{tpu_custom_call.1} parent=5 // pred_check_branch
        %118 = sbr.rel (%p116) target = $region20
      $region19: #{tpu_custom_call.1} parent=5 // pred_region
        // Predicated region
        $region21: #{tpu_custom_call.1} parent=19 // pred_check
          %p119 = pneg %p35
        $region22: #{tpu_custom_call.1} parent=19 // pred_check_branch
          %121 = sbr.rel (%p119) target = $region24
        $region23: #{tpu_custom_call.1} parent=19 // pred_region
          %s122 = sand.u32 %s25, 1
          %s123 = scalar_lea.sflag [#allocation3], %s122
          %s124 = sand.u32 %s25, 1
          %s125 = smul.addr %s124, 2
          %s126 = scalar_lea.vmem [#allocation2], %s125
          %128 = vsyncadd %s123, 0
          %s129 = smul.addr %s15, 2
          %s130 = scalar_lea.hbm %s0, %s129
          %s132 = sshll.u32 %s130, 4
          %s133 = int_to_ptr.hbm [resolvable:$true] %s132
          %s134 = sshll.u32 %s126, 4
          %s135 = int_to_ptr.vmem [resolvable:$true] %s134
          %137 = dma.hbm_to_vmem [thread:$0]  %s133, 32, %s135, %s123
        $region24: #{tpu_custom_call.1} parent=19 // pred_fallthru
          _
      $region20: #{tpu_custom_call.1} parent=5 // pred_fallthru
        _
      %p138 = scmp.le.s32.totalorder 1, %s15
      %p139 = scmp.lt.s32.totalorder %s15, 3
      %p140 = pnand %p138, %p139
      %p141 = pneg %p140
      // Predicated region
      $region25: #{tpu_custom_call.1} parent=5 // pred_check
        _
      $region26: #{tpu_custom_call.1} parent=5 // pred_check_branch
        %143 = sbr.rel (%p140) target = $region28
      $region27: #{tpu_custom_call.1} parent=5 // pred_region
        %s144 = ssub.s32 %s15, 1
        %s145 = sand.u32 %s28, 1
        %s146 = scalar_lea.sflag [#allocation3], %s145
        %s147 = sand.u32 %s28, 1
        %s148 = smul.addr %s147, 2
        %s149 = scalar_lea.vmem [#allocation2], %s148
        // Predicated region
        $region29: #{tpu_custom_call.1} parent=27 // pred_check
          %p150 = pneg %p41
        $region30: #{tpu_custom_call.1} parent=27 // pred_check_branch
          %152 = sbr.rel (%p150) target = $region32
        $region31: #{tpu_custom_call.1} parent=27 // pred_region
          %154 = dma.done %s146, 32
        $region32: #{tpu_custom_call.1} parent=27 // pred_fallthru
          _
        // Predicated region
        $region33: #{tpu_custom_call.1} parent=27 // pred_check
          %p155 = pneg %p62
        $region34: #{tpu_custom_call.1} parent=27 // pred_check_branch
          %157 = sbr.rel (%p155) target = $region36
        $region35: #{tpu_custom_call.1} parent=27 // pred_region
          %159 = dma.done [#allocation6], 32
        $region36: #{tpu_custom_call.1} parent=27 // pred_fallthru
          _
        %s160 = sand.u32 %s28, 1
        %s161 = scalar_lea.sflag [#allocation3], %s160
        %s162 = sand.u32 %s28, 1
        %s163 = smul.addr %s162, 2
        %s164 = scalar_lea.vmem [#allocation2], %s163
        %p165 = pneg %p41
        %p166 = pneg %p38
        %p167 = pneg %p62
        %p168 = pneg %p59
        %p169 = pneg %p88
        %p170 = pneg %p85
        %s171 = sand.u32 %s75, 1
        %s172 = scalar_lea.sflag [#allocation4], %s171
        %s173 = sand.u32 %s75, 1
        %s174 = smul.addr %s173, 2
        %s175 = scalar_lea.vmem [#allocation7], %s174
        %v176 = vld [vmem:[%s149] sm:$0x3]
        %v177 = vld [vmem:[#allocation5] sm:$0x3]
        %v178 = vadd.f32 %v176, %v177
        %179 = vst [vmem:[%s175] sm:$0x3] %v178
        %s180 = sand.u32 %s75, 1
        %s181 = scalar_lea.sflag [#allocation4], %s180
        %s182 = sand.u32 %s75, 1
        %s183 = smul.addr %s182, 2
        %s184 = scalar_lea.vmem [#allocation7], %s183
        // Predicated region
        $region37: #{tpu_custom_call.1} parent=27 // pred_check
          %p185 = pneg %p85
        $region38: #{tpu_custom_call.1} parent=27 // pred_check_branch
          %187 = sbr.rel (%p185) target = $region40
        $region39: #{tpu_custom_call.1} parent=27 // pred_region
          %189 = vsyncadd %s181, 0
          %s190 = smul.addr %s20, 2
          %s191 = scalar_lea.hbm %s2, %s190
          %s193 = sshll.u32 %s184, 4
          %s194 = int_to_ptr.vmem [resolvable:$true] %s193
          %s195 = sshll.u32 %s191, 4
          %s196 = int_to_ptr.hbm [resolvable:$true] %s195
          %198 = dma.vmem_to_hbm [thread:$0]  %s194, 32, %s196, %s181
        $region40: #{tpu_custom_call.1} parent=27 // pred_fallthru
          _
      $region28: #{tpu_custom_call.1} parent=5 // pred_fallthru
        _
      %p199 = scmp.le.s32.totalorder 2, %s15
      // Predicated region
      $region41: #{tpu_custom_call.1} parent=5 // pred_check
        %p200 = pneg %p199
      $region42: #{tpu_custom_call.1} parent=5 // pred_check_branch
        %202 = sbr.rel (%p200) target = $region44
      $region43: #{tpu_custom_call.1} parent=5 // pred_region
        %s203 = ssub.s32 %s15, 2
        // Predicated region
        $region45: #{tpu_custom_call.1} parent=43 // pred_check
          %p204 = pneg %p91
        $region46: #{tpu_custom_call.1} parent=43 // pred_check_branch
          %206 = sbr.rel (%p204) target = $region48
        $region47: #{tpu_custom_call.1} parent=43 // pred_region
          %s207 = sand.u32 %s76, 1
          %s208 = scalar_lea.sflag [#allocation4], %s207
          %s209 = sand.u32 %s76, 1
          %s210 = smul.addr %s209, 2
          %s211 = scalar_lea.vmem [#allocation7], %s210
          %213 = dma.done %s208, 32
        $region48: #{tpu_custom_call.1} parent=43 // pred_fallthru
          _
      $region44: #{tpu_custom_call.1} parent=5 // pred_fallthru
        _
    $region6: #{tpu_custom_call.1} parent=1 // loop_footer
      %s19 = sadd.s32 1, %s15
    $region7: #{tpu_custom_call.1} parent=1 // loop_footer_branch
      %14 = sbr.rel target = $region3
    $region8: #{tpu_custom_call.1} parent=1 // loop_exit
      _
    %214 = vsyncpa [#allocation3], 1
    %s215 = scalar_lea.sflag [#allocation3], 1
    %216 = vsyncpa %s215, 1
    %217 = vsyncpa [#allocation6], 1
    %218 = vsyncpa [#allocation4], 1
    %s219 = scalar_lea.sflag [#allocation4], 1
    %220 = vsyncpa %s219, 1

</llo_original>
